<compile_context>
chip_gen: v6e
topology: v6e:2x2x1
jax: 0.10.0
libtpu: 0.0.40
codegen_flags: <defaults>
</compile_context>

<pallas_src>
import functools

import jax
import jax.numpy as jnp
from jax.experimental import pallas as pl
from jax.experimental.pallas import tpu as pltpu


_NEG = -1e30  # large finite "already selected / self" sentinel (no inf arithmetic)


def _ipow(x, n: int):
    # static integer power via repeated multiplies (beta is a Python int)
    acc = x
    for _ in range(n - 1):
        acc = acc * x
    return acc


def _hdr_kernel(x_ref, loss_ref, acc_g, acc_n, *,
                alpha: float, beta: int, permute_len: int, eps: float, batch: int):
    k = pl.program_id(0)

    @pl.when(k == 0)
    def _():
        acc_g[...] = jnp.zeros_like(acc_g)
        acc_n[...] = jnp.zeros_like(acc_n)

    # One Gram matmul per K step over the concatenated [student; teacher]
    # operand.  Contract dim 1 of both operands -> no transpose materialized.
    x = x_ref[...]                                         # (2B, tk), f32 or bf16
    dn = (((1,), (1,)), ((), ()))
    acc_g[...] += jax.lax.dot_general(x, x, dn, preferred_element_type=jnp.float32)
    xf = x.astype(jnp.float32)
    acc_n[...] += jnp.sum(xf * xf, axis=1, keepdims=True)  # squared row norms

    @pl.when(k == pl.num_programs(0) - 1)
    def _():
        Bc = batch
        B2 = 2 * Bc
        prod = acc_g[...]                                  # (2B, 2B) f32 Gram
        sq_row = acc_n[...]                                # (2B, 1)  f32 ||x_i||^2

        row2 = jax.lax.broadcasted_iota(jnp.int32, (B2, B2), 0)
        col2 = jax.lax.broadcasted_iota(jnp.int32, (B2, B2), 1)
        diag2 = row2 == col2

        # Lane-broadcast copy of the squared norms, taken from the Gram
        # diagonal with a single masked axis=0 reduction (no in-kernel
        # transpose of the (2B,1) accumulator).
        sq_col = jnp.sum(jnp.where(diag2, prod, 0.0), axis=0, keepdims=True)

        d2 = jnp.maximum(sq_row + sq_col - 2.0 * prod, eps)   # clamp(min=eps)
        d = jnp.sqrt(d2)
        d = jnp.where(diag2, 0.0, d)                        # pdist zeroes the diag
        score = -alpha * _ipow(d, beta)                     # (2B, 2B)

        score_s = score[:Bc, :Bc]                           # student block
        score_t = score[Bc:, Bc:]                           # teacher block

        row_b = jax.lax.broadcasted_iota(jnp.int32, (Bc, Bc), 0)
        col_b = jax.lax.broadcasted_iota(jnp.int32, (Bc, Bc), 1)
        diag_b = row_b == col_b

        # Hard top-`permute_len` over teacher scores (self excluded).  Each
        # step does 2 cross-lane reductions: row max + masked gather of the
        # matching student score.  Exact teacher ties would select/mask all
        # tied columns at once (measure-zero for real embeddings; torch.sort
        # would pick one arbitrarily anyway).
        masked_t = jnp.where(diag_b, _NEG, score_t)
        ordered = []
        for _ in range(permute_len):
            m = jnp.max(masked_t, axis=1, keepdims=True)            # (B, 1)
            is_max = masked_t == m
            ordered.append(jnp.sum(jnp.where(is_max, score_s, 0.0),
                                   axis=1, keepdims=True))          # (B, 1)
            masked_t = jnp.where(is_max, _NEG, masked_t)

        # sum_i ( o_i - logsumexp(o_i .. o_{P-1}) ) via reverse running
        # logaddexp: O(P) exp/log instead of O(P^2).
        lse = ordered[-1]
        log_prob = jnp.zeros_like(lse)                      # last term is exactly 0
        for i in range(permute_len - 2, -1, -1):
            a = ordered[i]
            mm = jnp.maximum(a, lse)
            lse = mm + jnp.log(jnp.exp(a - mm) + jnp.exp(lse - mm))
            log_prob = log_prob + (a - lse)

        # loss = mean(-log_prob)
        loss_ref[...] = jnp.sum(-log_prob, axis=0, keepdims=True) * (1.0 / Bc)


def _vmem_capacity_bytes() -> int:
    try:
        return int(pltpu.get_tpu_info().vmem_capacity_bytes)
    except Exception:
        return 64 * 1024 * 1024        # conservative: v7x per-TensorCore VMEM


def _pick_tk(D: int, max_tk: int) -> int:
    if D <= max_tk:
        return D                       # single K step
    t = (max_tk // 128) * 128
    while t >= 128:
        if D % t == 0:
            return t
        t -= 128
    return D                           # no aligned divisor fits: one big step


def hard_dark_rank(student, teacher, *, alpha=3.0, beta=3, permute_len=4,
                   eps=1e-12, mxu_dtype=None, tile_k=None):
    """student, teacher: (B, D) embeddings (higher ranks are flattened per row).

    mxu_dtype: optionally cast the streamed/MXU operand (e.g. jnp.bfloat16) to
    halve HBM traffic; Gram accumulation and the epilogue stay in f32.
    tile_k:    optional explicit feature tile (must divide D; multiple of 128
               or equal to D).  Default: sized from this chip's VMEM.
    """
    assert student.shape == teacher.shape
    if student.ndim > 2:
        student = student.reshape(student.shape[0], -1)
        teacher = teacher.reshape(teacher.shape[0], -1)
    B, D = student.shape
    assert permute_len + 1 <= B, "need at least permute_len+1 samples per batch"
    B2 = 2 * B

    # Single streamed operand: [student; teacher] -> one Gram, one DMA stream.
    x = jnp.concatenate([student, teacher], axis=0)
    if mxu_dtype is not None:
        x = x.astype(mxu_dtype)
    itemsize = jnp.dtype(x.dtype).itemsize

    # Feature tile sized against this generation's VMEM (64 MiB/TC on v7x,
    # 128 MiB on v5e/v6e), leaving room for the accumulators, the epilogue
    # temporaries and the double-buffered input.
    phys = _vmem_capacity_bytes()
    target = int(phys * 0.75)
    acc_bytes = 4 * B2 * B2 + 4 * B2 * 128          # Gram + (lane-padded) norms
    epi_bytes = 16 * 4 * B2 * B2                    # epilogue temporaries headroom
    reserve = acc_bytes + epi_bytes + (2 << 20)
    max_tk = max((target - reserve) // (2 * B2 * itemsize), 128)

    if tile_k is not None:
        assert D % tile_k == 0 and (tile_k % 128 == 0 or tile_k == D)
        tk = int(tile_k)
    else:
        tk = _pick_tk(D, int(max_tk))
    grid_k = D // tk

    footprint = 2 * B2 * tk * itemsize + reserve
    vmem_limit = int(min(phys * 0.9, max(footprint, 32 << 20)))

    kernel = functools.partial(
        _hdr_kernel, alpha=float(alpha), beta=int(beta),
        permute_len=int(permute_len), eps=float(eps), batch=B)

    cost = pl.CostEstimate(
        flops=2 * B2 * B2 * D + 64 * B2 * B2,
        transcendentals=B2 * B2 + 4 * permute_len * B,
        bytes_accessed=B2 * D * itemsize + 4,
    )

    out = pl.pallas_call(
        kernel,
        out_shape=jax.ShapeDtypeStruct((1, 1), jnp.float32),
        grid=(grid_k,),
        in_specs=[pl.BlockSpec((B2, tk), lambda k: (0, k))],
        out_specs=pl.BlockSpec((1, 1), lambda k: (0, 0)),
        scratch_shapes=[
            pltpu.VMEM((B2, B2), jnp.float32),   # Gram accumulator
            pltpu.VMEM((B2, 1), jnp.float32),    # squared-row-norm accumulator
        ],
        compiler_params=pltpu.CompilerParams(
            dimension_semantics=("arbitrary",),
            vmem_limit_bytes=vmem_limit),
        cost_estimate=cost,
    )(x)
    return out[0, 0]


if __name__ == "__main__":
    B, D = 16, 1024          # small batch of D-dim embeddings
    ALPHA, BETA, P = 3.0, 3, 4

    key = jax.random.PRNGKey(0)
    ks, kt = jax.random.split(key)
    student = jax.random.normal(ks, (B, D), dtype=jnp.float32)
    teacher = jax.random.normal(kt, (B, D), dtype=jnp.float32)
    # L2-normalized embeddings (the usual metric-learning setting).
    student = student / jnp.linalg.norm(student, axis=1, keepdims=True)
    teacher = teacher / jnp.linalg.norm(teacher, axis=1, keepdims=True)

    # Default tiling (single K step at these shapes).
    loss = hard_dark_rank(student, teacher, alpha=ALPHA, beta=BETA, permute_len=P)
    jax.block_until_ready(loss)
    # Force K-tiling (grid of 4) to exercise the accumulation path as well.
    loss_tiled = hard_dark_rank(student, teacher, alpha=ALPHA, beta=BETA,
                                permute_len=P, tile_k=256)
    jax.block_until_ready(loss_tiled)

    # Pure-JAX reference (mirrors the PyTorch module).
    def pdist_ref(e, eps=1e-12):
        sq = jnp.sum(e * e, axis=1)
        prod = e @ e.T
        d2 = jnp.maximum(sq[:, None] + sq[None, :] - 2.0 * prod, eps)
        d = jnp.sqrt(d2)
        return d * (1.0 - jnp.eye(e.shape[0], dtype=d.dtype))

    score_t = -ALPHA * pdist_ref(teacher) ** BETA
    score_s = -ALPHA * pdist_ref(student) ** BETA
    idx = jnp.argsort(-score_t, axis=1)[:, 1:P + 1]
    ordered = jnp.take_along_axis(score_s, idx, axis=1)
    lses = jnp.stack([jax.nn.logsumexp(ordered[:, i:], axis=1) for i in range(P)], axis=1)
    log_prob = jnp.sum(ordered - lses, axis=1)
    ref_loss = jnp.mean(-log_prob)

    assert loss.shape == ()
    assert jnp.allclose(loss, ref_loss, atol=1e-4, rtol=1e-4), (loss, ref_loss)
    assert jnp.allclose(loss_tiled, ref_loss, atol=1e-4, rtol=1e-4), (loss_tiled, ref_loss)
    print("KERNEL_OK")
</pallas_src>

<mosaic_0001>
module attributes {stable_mosaic.version = 11 : i64} {
  func.func @_hdr_kernel(%arg0: i32, %arg1: memref<32x1024xf32, #tpu.memory_space<vmem>>, %arg2: memref<1x1xf32, #tpu.memory_space<vmem>>, %arg3: memref<32x32xf32, #tpu.memory_space<vmem>>, %arg4: memref<32x1xf32, #tpu.memory_space<vmem>>) attributes {dimension_semantics = [#tpu.dimension_semantics<arbitrary>], iteration_bounds = array<i64: 1>, scalar_prefetch = 0 : i64, scratch_operands = 2 : i64, tpu.core_type = #tpu.core_type<tc>, window_params = [{transform_indices = @transform_0, window_bounds = array<i64: 32, 1024>}, {pipeline_mode = #tpu.pipeline_mode<synchronous>, transform_indices = @transform_1, window_bounds = array<i64: 1, 1>}]} {
    %c0_i32 = arith.constant 0 : i32
    %0 = arith.cmpi eq, %arg0, %c0_i32 : i32
    %1 = arith.extui %0 : i1 to i32
    %c0_i32_0 = arith.constant 0 : i32
    %2 = arith.cmpi ne, %1, %c0_i32_0 : i32
    scf.if %2 {
      %cst_13 = arith.constant 0.000000e+00 : f32
      %17 = vector.broadcast %cst_13 : f32 to vector<32x32xf32>
      %c0_14 = arith.constant 0 : index
      %c0_15 = arith.constant 0 : index
      %18 = vector.load %arg3[%c0_14, %c0_15] : memref<32x32xf32, #tpu.memory_space<vmem>>, vector<32x32xf32>
      tpu.vector_store %arg3[%c0_14, %c0_15], %17 {strides = array<i32>} : memref<32x32xf32, #tpu.memory_space<vmem>>, vector<32x32xf32>,
      %cst_16 = arith.constant 0.000000e+00 : f32
      %19 = vector.broadcast %cst_16 : f32 to vector<32x1xf32>
      %c0_17 = arith.constant 0 : index
      %c0_18 = arith.constant 0 : index
      %20 = vector.load %arg4[%c0_17, %c0_18] : memref<32x1xf32, #tpu.memory_space<vmem>>, vector<32x1xf32>
      tpu.vector_store %arg4[%c0_17, %c0_18], %19 {strides = array<i32>} : memref<32x1xf32, #tpu.memory_space<vmem>>, vector<32x1xf32>,
    } else {
    }
    %c0 = arith.constant 0 : index
    %c0_1 = arith.constant 0 : index
    %3 = vector.load %arg1[%c0, %c0_1] : memref<32x1024xf32, #tpu.memory_space<vmem>>, vector<32x1024xf32>
    %c0_2 = arith.constant 0 : index
    %c0_3 = arith.constant 0 : index
    %4 = vector.load %arg3[%c0_2, %c0_3] : memref<32x32xf32, #tpu.memory_space<vmem>>, vector<32x32xf32>
    %cst = arith.constant dense<0.000000e+00> : vector<32x32xf32>
    %5 = tpu.matmul %3, %3, %cst {dimension_numbers = #tpu.dot_dimension_numbers<[1], [1], [0], [0], [0, 0, 1, 0], [], []>} : vector<32x1024xf32>, vector<32x1024xf32>, vector<32x32xf32> -> vector<32x32xf32>
    %6 = arith.addf %4, %5 : vector<32x32xf32>
    %c0_4 = arith.constant 0 : index
    %c0_5 = arith.constant 0 : index
    %7 = vector.load %arg3[%c0_4, %c0_5] : memref<32x32xf32, #tpu.memory_space<vmem>>, vector<32x32xf32>
    tpu.vector_store %arg3[%c0_4, %c0_5], %6 {strides = array<i32>} : memref<32x32xf32, #tpu.memory_space<vmem>>, vector<32x32xf32>,
    %c0_6 = arith.constant 0 : index
    %c0_7 = arith.constant 0 : index
    %8 = vector.load %arg4[%c0_6, %c0_7] : memref<32x1xf32, #tpu.memory_space<vmem>>, vector<32x1xf32>
    %9 = arith.mulf %3, %3 : vector<32x1024xf32>
    %cst_8 = arith.constant dense<0.000000e+00> : vector<32xf32>
    %10 = vector.multi_reduction <add>, %9, %cst_8 [1] : vector<32x1024xf32> to vector<32xf32>
    %11 = vector.shape_cast %10 : vector<32xf32> to vector<32x1xf32>
    %12 = arith.addf %8, %11 : vector<32x1xf32>
    %c0_9 = arith.constant 0 : index
    %c0_10 = arith.constant 0 : index
    %13 = vector.load %arg4[%c0_9, %c0_10] : memref<32x1xf32, #tpu.memory_space<vmem>>, vector<32x1xf32>
    tpu.vector_store %arg4[%c0_9, %c0_10], %12 {strides = array<i32>} : memref<32x1xf32, #tpu.memory_space<vmem>>, vector<32x1xf32>,
    %c0_i32_11 = arith.constant 0 : i32
    %14 = arith.cmpi eq, %arg0, %c0_i32_11 : i32
    %15 = arith.extui %14 : i1 to i32
    %c0_i32_12 = arith.constant 0 : i32
    %16 = arith.cmpi ne, %15, %c0_i32_12 : i32
    scf.if %16 {
      %c0_13 = arith.constant 0 : index
      %c0_14 = arith.constant 0 : index
      %17 = vector.load %arg3[%c0_13, %c0_14] : memref<32x32xf32, #tpu.memory_space<vmem>>, vector<32x32xf32>
      %c0_15 = arith.constant 0 : index
      %c0_16 = arith.constant 0 : index
      %18 = vector.load %arg4[%c0_15, %c0_16] : memref<32x1xf32, #tpu.memory_space<vmem>>, vector<32x1xf32>
      %19 = tpu.iota {dimensions = array<i32: 0>} : vector<32x32xi32>
      %20 = tpu.iota {dimensions = array<i32: 1>} : vector<32x32xi32>
      %21 = arith.cmpi eq, %19, %20 : vector<32x32xi32>
      %cst_17 = arith.constant 0.000000e+00 : f32
      %22 = vector.broadcast %cst_17 : f32 to vector<32x32xf32>
      %23 = arith.select %21, %17, %22 : vector<32x32xi1>, vector<32x32xf32>
      %cst_18 = arith.constant dense<0.000000e+00> : vector<32xf32>
      %24 = vector.multi_reduction <add>, %23, %cst_18 [0] : vector<32x32xf32> to vector<32xf32>
      %25 = vector.shape_cast %24 : vector<32xf32> to vector<1x32xf32>
      %26 = vector.broadcast %18 : vector<32x1xf32> to vector<32x32xf32>
      %27 = vector.broadcast %25 : vector<1x32xf32> to vector<32x32xf32>
      %28 = arith.addf %26, %27 : vector<32x32xf32>
      %cst_19 = arith.constant 2.000000e+00 : f32
      %29 = vector.broadcast %cst_19 : f32 to vector<32x32xf32>
      %30 = arith.mulf %29, %17 : vector<32x32xf32>
      %31 = arith.subf %28, %30 : vector<32x32xf32>
      %cst_20 = arith.constant 9.99999996E-13 : f32
      %32 = vector.broadcast %cst_20 : f32 to vector<32x32xf32>
      %33 = arith.maximumf %31, %32 : vector<32x32xf32>
      %34 = math.sqrt %33 : vector<32x32xf32>
      %cst_21 = arith.constant 0.000000e+00 : f32
      %35 = vector.broadcast %cst_21 : f32 to vector<32x32xf32>
      %36 = arith.select %21, %35, %34 : vector<32x32xi1>, vector<32x32xf32>
      %37 = arith.mulf %36, %36 : vector<32x32xf32>
      %38 = arith.mulf %37, %36 : vector<32x32xf32>
      %cst_22 = arith.constant -3.000000e+00 : f32
      %39 = vector.broadcast %cst_22 : f32 to vector<32x32xf32>
      %40 = arith.mulf %39, %38 : vector<32x32xf32>
      %41 = vector.extract_strided_slice %40 {offsets = [0, 0], sizes = [16, 16], strides = [1, 1]} : vector<32x32xf32> to vector<16x16xf32>
      %42 = vector.extract_strided_slice %40 {offsets = [16, 16], sizes = [16, 16], strides = [1, 1]} : vector<32x32xf32> to vector<16x16xf32>
      %43 = tpu.iota {dimensions = array<i32: 0>} : vector<16x16xi32>
      %44 = tpu.iota {dimensions = array<i32: 1>} : vector<16x16xi32>
      %45 = arith.cmpi eq, %43, %44 : vector<16x16xi32>
      %cst_23 = arith.constant -1.000000e+30 : f32
      %46 = vector.broadcast %cst_23 : f32 to vector<16x16xf32>
      %47 = arith.select %45, %46, %42 : vector<16x16xi1>, vector<16x16xf32>
      %cst_24 = arith.constant dense<0xFF800000> : vector<16xf32>
      %48 = vector.multi_reduction <maximumf>, %47, %cst_24 [1] : vector<16x16xf32> to vector<16xf32>
      %49 = vector.shape_cast %48 : vector<16xf32> to vector<16x1xf32>
      %50 = vector.broadcast %49 : vector<16x1xf32> to vector<16x16xf32>
      %51 = arith.cmpf oeq, %47, %50 : vector<16x16xf32>
      %cst_25 = arith.constant 0.000000e+00 : f32
      %52 = vector.broadcast %cst_25 : f32 to vector<16x16xf32>
      %53 = arith.select %51, %41, %52 : vector<16x16xi1>, vector<16x16xf32>
      %cst_26 = arith.constant dense<0.000000e+00> : vector<16xf32>
      %54 = vector.multi_reduction <add>, %53, %cst_26 [1] : vector<16x16xf32> to vector<16xf32>
      %55 = vector.shape_cast %54 : vector<16xf32> to vector<16x1xf32>
      %cst_27 = arith.constant -1.000000e+30 : f32
      %56 = vector.broadcast %cst_27 : f32 to vector<16x16xf32>
      %57 = arith.select %51, %56, %47 : vector<16x16xi1>, vector<16x16xf32>
      %cst_28 = arith.constant dense<0xFF800000> : vector<16xf32>
      %58 = vector.multi_reduction <maximumf>, %57, %cst_28 [1] : vector<16x16xf32> to vector<16xf32>
      %59 = vector.shape_cast %58 : vector<16xf32> to vector<16x1xf32>
      %60 = vector.broadcast %59 : vector<16x1xf32> to vector<16x16xf32>
      %61 = arith.cmpf oeq, %57, %60 : vector<16x16xf32>
      %cst_29 = arith.constant 0.000000e+00 : f32
      %62 = vector.broadcast %cst_29 : f32 to vector<16x16xf32>
      %63 = arith.select %61, %41, %62 : vector<16x16xi1>, vector<16x16xf32>
      %cst_30 = arith.constant dense<0.000000e+00> : vector<16xf32>
      %64 = vector.multi_reduction <add>, %63, %cst_30 [1] : vector<16x16xf32> to vector<16xf32>
      %65 = vector.shape_cast %64 : vector<16xf32> to vector<16x1xf32>
      %cst_31 = arith.constant -1.000000e+30 : f32
      %66 = vector.broadcast %cst_31 : f32 to vector<16x16xf32>
      %67 = arith.select %61, %66, %57 : vector<16x16xi1>, vector<16x16xf32>
      %cst_32 = arith.constant dense<0xFF800000> : vector<16xf32>
      %68 = vector.multi_reduction <maximumf>, %67, %cst_32 [1] : vector<16x16xf32> to vector<16xf32>
      %69 = vector.shape_cast %68 : vector<16xf32> to vector<16x1xf32>
      %70 = vector.broadcast %69 : vector<16x1xf32> to vector<16x16xf32>
      %71 = arith.cmpf oeq, %67, %70 : vector<16x16xf32>
      %cst_33 = arith.constant 0.000000e+00 : f32
      %72 = vector.broadcast %cst_33 : f32 to vector<16x16xf32>
      %73 = arith.select %71, %41, %72 : vector<16x16xi1>, vector<16x16xf32>
      %cst_34 = arith.constant dense<0.000000e+00> : vector<16xf32>
      %74 = vector.multi_reduction <add>, %73, %cst_34 [1] : vector<16x16xf32> to vector<16xf32>
      %75 = vector.shape_cast %74 : vector<16xf32> to vector<16x1xf32>
      %cst_35 = arith.constant -1.000000e+30 : f32
      %76 = vector.broadcast %cst_35 : f32 to vector<16x16xf32>
      %77 = arith.select %71, %76, %67 : vector<16x16xi1>, vector<16x16xf32>
      %cst_36 = arith.constant dense<0xFF800000> : vector<16xf32>
      %78 = vector.multi_reduction <maximumf>, %77, %cst_36 [1] : vector<16x16xf32> to vector<16xf32>
      %79 = vector.shape_cast %78 : vector<16xf32> to vector<16x1xf32>
      %80 = vector.broadcast %79 : vector<16x1xf32> to vector<16x16xf32>
      %81 = arith.cmpf oeq, %77, %80 : vector<16x16xf32>
      %cst_37 = arith.constant 0.000000e+00 : f32
      %82 = vector.broadcast %cst_37 : f32 to vector<16x16xf32>
      %83 = arith.select %81, %41, %82 : vector<16x16xi1>, vector<16x16xf32>
      %cst_38 = arith.constant dense<0.000000e+00> : vector<16xf32>
      %84 = vector.multi_reduction <add>, %83, %cst_38 [1] : vector<16x16xf32> to vector<16xf32>
      %85 = vector.shape_cast %84 : vector<16xf32> to vector<16x1xf32>
      %cst_39 = arith.constant 0.000000e+00 : f32
      %86 = vector.broadcast %cst_39 : f32 to vector<16x1xf32>
      %87 = arith.maximumf %75, %85 : vector<16x1xf32>
      %88 = arith.subf %75, %87 : vector<16x1xf32>
      %89 = math.exp %88 : vector<16x1xf32>
      %90 = arith.subf %85, %87 : vector<16x1xf32>
      %91 = math.exp %90 : vector<16x1xf32>
      %92 = arith.addf %89, %91 : vector<16x1xf32>
      %93 = math.log %92 : vector<16x1xf32>
      %94 = arith.addf %87, %93 : vector<16x1xf32>
      %95 = arith.subf %75, %94 : vector<16x1xf32>
      %96 = arith.addf %86, %95 : vector<16x1xf32>
      %97 = arith.maximumf %65, %94 : vector<16x1xf32>
      %98 = arith.subf %65, %97 : vector<16x1xf32>
      %99 = math.exp %98 : vector<16x1xf32>
      %100 = arith.subf %94, %97 : vector<16x1xf32>
      %101 = math.exp %100 : vector<16x1xf32>
      %102 = arith.addf %99, %101 : vector<16x1xf32>
      %103 = math.log %102 : vector<16x1xf32>
      %104 = arith.addf %97, %103 : vector<16x1xf32>
      %105 = arith.subf %65, %104 : vector<16x1xf32>
      %106 = arith.addf %96, %105 : vector<16x1xf32>
      %107 = arith.maximumf %55, %104 : vector<16x1xf32>
      %108 = arith.subf %55, %107 : vector<16x1xf32>
      %109 = math.exp %108 : vector<16x1xf32>
      %110 = arith.subf %104, %107 : vector<16x1xf32>
      %111 = math.exp %110 : vector<16x1xf32>
      %112 = arith.addf %109, %111 : vector<16x1xf32>
      %113 = math.log %112 : vector<16x1xf32>
      %114 = arith.addf %107, %113 : vector<16x1xf32>
      %115 = arith.subf %55, %114 : vector<16x1xf32>
      %116 = arith.addf %106, %115 : vector<16x1xf32>
      %cst_40 = arith.constant 0.000000e+00 : f32
      %117 = vector.broadcast %cst_40 : f32 to vector<16x1xf32>
      %118 = arith.subf %117, %116 : vector<16x1xf32>
      %cst_41 = arith.constant dense<0.000000e+00> : vector<1xf32>
      %119 = vector.multi_reduction <add>, %118, %cst_41 [0] : vector<16x1xf32> to vector<1xf32>
      %120 = vector.shape_cast %119 : vector<1xf32> to vector<1x1xf32>
      %cst_42 = arith.constant 6.250000e-02 : f32
      %121 = vector.broadcast %cst_42 : f32 to vector<1x1xf32>
      %122 = arith.mulf %120, %121 : vector<1x1xf32>
      %c0_43 = arith.constant 0 : index
      %c0_44 = arith.constant 0 : index
      %123 = vector.load %arg2[%c0_43, %c0_44] : memref<1x1xf32, #tpu.memory_space<vmem>>, vector<1x1xf32>
      tpu.vector_store %arg2[%c0_43, %c0_44], %122 {strides = array<i32>} : memref<1x1xf32, #tpu.memory_space<vmem>>, vector<1x1xf32>,
    } else {
    }
    return
  }
  func.func @transform_0(%arg0: i32) -> (i32, i32) {
    %c0_i32 = arith.constant 0 : i32
    %c0_i32_0 = arith.constant 0 : i32
    return %c0_i32, %arg0 : i32, i32
  }
  func.func @transform_1(%arg0: i32) -> (i32, i32) {
    %c0_i32 = arith.constant 0 : i32
    %c0_i32_0 = arith.constant 0 : i32
    %c0_i32_1 = arith.constant 0 : i32
    return %c0_i32, %c0_i32_0 : i32, i32
  }
}

</mosaic_0001>

<llo_original>
// kernel: tpu_custom_call.1
$region0: #{tpu_custom_call.1}
  #allocation0 [shape = 'u32[]', space=smem, size = 0x4, offset = 0x4, fixed_abs, tag = 'smem constant byte address 0x4 - core index']
  #allocation1 [shape = 'u32[144,128]{1,0:T(1,128)}', space=vmem, size = 0x12000, scoped, tag = 'internal scratch']
  #allocation2 [shape = 'f32[32,32]{1,0:T(8,128)}', space=vmem, size = 0x4000, scoped, tag = 'scratch operand']
  #allocation3 [shape = 'f32[32,1]{1,0:T(8,128)}', space=vmem, size = 0x4000, scoped, tag = 'scratch operand']
  %s0 = inlined_call_operand.hbm [shape: f32[32,1024], index: 0, kind: input, shape index: {}]
  %s1 = inlined_call_operand.hbm [shape: f32[1,1], index: 1, kind: output, shape index: {}]
  %s2 = sld [smem:[#allocation0]]
  $region26: #{tpu_custom_call.1} parent=0
    _
  %s4 = ssub.s32 1, %s2
  %s5 = scalar_select 0, %s4, %s2
  $region1: #{tpu_custom_call.1} parent=0
    #allocation4 [shape = 'u8[131072]{0}', space=vmem, size = 0x20000, scoped, tag = 'input window, operand 0, single buffered']
    #allocation5 [shape = 's32[1]{0}', space=sflag, size = 0x4, scoped, tag = 'scoped memory for tpu_custom_call.1']
    #allocation6 [shape = 's32[1]{0}', space=sflag, size = 0x4, scoped, tag = 'scoped memory for tpu_custom_call.1']
    #allocation7 [shape = 'u8[512]{0}', space=vmem, size = 0x400, scoped, tag = 'output window, operand 0, single buffered']
    %6 = vsyncpa [#allocation5], 0
    %7 = vsyncpa [#allocation6], 0
    // Predicated region
    $region2: #{tpu_custom_call.1} parent=1 // pred_check
      _
    $region3: #{tpu_custom_call.1} parent=1 // pred_check_branch
      %9 = sbr.rel (0) target = $region5
    $region4: #{tpu_custom_call.1} parent=1 // pred_region
      %s11 = ssub.s32 4096, 4096
      %12 = vsyncadd [#allocation5], %s11
      %s13 = sshll.u32 [#allocation4], 4
      %s14 = int_to_ptr.vmem [resolvable:$true] %s13
      %19 = dma.hbm_to_vmem [thread:$0]  %s0, 4096, %s14, [#allocation5], 1024, 1024, 64
    $region5: #{tpu_custom_call.1} parent=1 // pred_fallthru
      _
    // Predicated region
    $region6: #{tpu_custom_call.1} parent=1 // pred_check
      _
    $region7: #{tpu_custom_call.1} parent=1 // pred_check_branch
      %21 = sbr.rel (0) target = $region9
    $region8: #{tpu_custom_call.1} parent=1 // pred_region
      %22 = dma.done [#allocation5], 4096
    $region9: #{tpu_custom_call.1} parent=1 // pred_fallthru
      _
    %p23 = scmp.eq.s32.totalorder 0, 0
    // Predicated region
    $region10: #{tpu_custom_call.1} parent=1 // pred_check
      %p24 = pneg %p23
    $region11: #{tpu_custom_call.1} parent=1 // pred_check_branch
      %26 = sbr.rel (%p24) target = $region13
    $region12: #{tpu_custom_call.1} parent=1 // pred_region
      %vm27 = vcmask 261120
      %28 = vst.msk [vmem:[#allocation2] sm:$0xff] %vm27, 0.0
      %29 = vst.msk [vmem:[#allocation2 + $0x8] sm:$0xff] %vm27, 0.0
      %30 = vst.msk [vmem:[#allocation2 + $0x10] sm:$0xff] %vm27, 0.0
      %31 = vst.msk [vmem:[#allocation2 + $0x18] sm:$0xff] %vm27, 0.0
      %vm32 = vcmask 7168
      %33 = vst.msk [vmem:[#allocation3] sm:$0xff] %vm32, 0.0
      %34 = vst.msk [vmem:[#allocation3 + $0x8] sm:$0xff] %vm32, 0.0
      %35 = vst.msk [vmem:[#allocation3 + $0x10] sm:$0xff] %vm32, 0.0
      %36 = vst.msk [vmem:[#allocation3 + $0x18] sm:$0xff] %vm32, 0.0
    $region13: #{tpu_custom_call.1} parent=1 // pred_fallthru
      _
    %v37 = vld [vmem:[#allocation4] sm:$0xff]
    %v38 = vld [vmem:[#allocation4 + $0x8] sm:$0xff]
    %v39 = vld [vmem:[#allocation4 + $0x10] sm:$0xff]
    %v40 = vld [vmem:[#allocation4 + $0x18] sm:$0xff]
    %v41 = vld [vmem:[#allocation4 + $0x20] sm:$0xff]
    %v42 = vld [vmem:[#allocation4 + $0x28] sm:$0xff]
    %v43 = vld [vmem:[#allocation4 + $0x30] sm:$0xff]
    %v44 = vld [vmem:[#allocation4 + $0x38] sm:$0xff]
    %v45 = vld [vmem:[#allocation4 + $0x40] sm:$0xff]
    %v46 = vld [vmem:[#allocation4 + $0x48] sm:$0xff]
    %v47 = vld [vmem:[#allocation4 + $0x50] sm:$0xff]
    %v48 = vld [vmem:[#allocation4 + $0x58] sm:$0xff]
    %v49 = vld [vmem:[#allocation4 + $0x60] sm:$0xff]
    %v50 = vld [vmem:[#allocation4 + $0x68] sm:$0xff]
    %v51 = vld [vmem:[#allocation4 + $0x70] sm:$0xff]
    %v52 = vld [vmem:[#allocation4 + $0x78] sm:$0xff]
    %v53 = vld [vmem:[#allocation4 + $0x80] sm:$0xff]
    %v54 = vld [vmem:[#allocation4 + $0x88] sm:$0xff]
    %v55 = vld [vmem:[#allocation4 + $0x90] sm:$0xff]
    %v56 = vld [vmem:[#allocation4 + $0x98] sm:$0xff]
    %v57 = vld [vmem:[#allocation4 + $0xa0] sm:$0xff]
    %v58 = vld [vmem:[#allocation4 + $0xa8] sm:$0xff]
    %v59 = vld [vmem:[#allocation4 + $0xb0] sm:$0xff]
    %v60 = vld [vmem:[#allocation4 + $0xb8] sm:$0xff]
    %v61 = vld [vmem:[#allocation4 + $0xc0] sm:$0xff]
    %v62 = vld [vmem:[#allocation4 + $0xc8] sm:$0xff]
    %v63 = vld [vmem:[#allocation4 + $0xd0] sm:$0xff]
    %v64 = vld [vmem:[#allocation4 + $0xd8] sm:$0xff]
    %v65 = vld [vmem:[#allocation4 + $0xe0] sm:$0xff]
    %v66 = vld [vmem:[#allocation4 + $0xe8] sm:$0xff]
    %v67 = vld [vmem:[#allocation4 + $0xf0] sm:$0xff]
    %v68 = vld [vmem:[#allocation4 + $0xf8] sm:$0xff]
    %v69 = vld [vmem:[#allocation2] sm:$0xff]
    %v70 = vld [vmem:[#allocation2 + $0x8] sm:$0xff]
    %v71 = vld [vmem:[#allocation2 + $0x10] sm:$0xff]
    %v72 = vld [vmem:[#allocation2 + $0x18] sm:$0xff]
    %73 = vmatprep.subr.mxu0 0.0
    %74 = vmatpush1.xpose.msra.mxu0 0.0
    %75 = vmatprep.subr.mxu0 0.0
    %76 = vmatpush1.xpose.msra.mxu0 0.0
    %77 = vmatprep.subr.mxu0 0.0
    %78 = vmatpush1.xpose.msra.mxu0 0.0
    %79 = vmatprep.subr.mxu0 0.0
    %80 = vmatpush1.xpose.msra.mxu0 0.0
    %81 = vmatprep.subr.mxu0 0.0
    %82 = vmatpush1.xpose.msra.mxu0 0.0
    %83 = vmatprep.subr.mxu0 0.0
    %84 = vmatpush1.xpose.msra.mxu0 0.0
    %85 = vmatprep.subr.mxu0 0.0
    %86 = vmatpush1.xpose.msra.mxu0 0.0
    %87 = vmatprep.subr.mxu0 0.0
    %88 = vmatpush1.xpose.msra.mxu0 0.0
    %89 = vmatprep.subr.mxu0 0.0
    %90 = vmatpush1.xpose.msra.mxu0 0.0
    %91 = vmatprep.subr.mxu0 0.0
    %92 = vmatpush1.xpose.msra.mxu0 0.0
    %93 = vmatprep.subr.mxu0 0.0
    %94 = vmatpush1.xpose.msra.mxu0 0.0
    %95 = vmatprep.subr.mxu0 0.0
    %96 = vmatpush1.xpose.msra.mxu0 0.0
    %97 = vmatprep.subr.mxu0 %v62
    %98 = vmatpush1.xpose.msra.mxu0 %v61
    %99 = vmatprep.subr.mxu0 %v54
    %100 = vmatpush1.xpose.msra.mxu0 %v53
    %101 = vmatprep.subr.mxu0 %v46
    %102 = vmatpush1.xpose.msra.mxu0 %v45
    %103 = vmatprep.subr.mxu0 %v38
    %104 = vmatpush1.xpose.msra.mxu0 %v37
    %105 = vmatprep.subr.mxu0 0.0
    %106 = vmatpush2.xpose.msra.mxu0 0.0
    %107 = vmatprep.subr.mxu0 0.0
    %108 = vmatpush2.xpose.msra.mxu0 0.0
    %109 = vmatprep.subr.mxu0 0.0
    %110 = vmatpush2.xpose.msra.mxu0 0.0
    %111 = vmatprep.subr.mxu0 0.0
    %112 = vmatpush2.xpose.msra.mxu0 0.0
    %113 = vmatprep.subr.mxu0 0.0
    %114 = vmatpush2.xpose.msra.mxu0 0.0
    %115 = vmatprep.subr.mxu0 0.0
    %116 = vmatpush2.xpose.msra.mxu0 0.0
    %117 = vmatprep.subr.mxu0 0.0
    %118 = vmatpush2.xpose.msra.mxu0 0.0
    %119 = vmatprep.subr.mxu0 0.0
    %120 = vmatpush2.xpose.msra.mxu0 0.0
    %121 = vmatprep.subr.mxu0 0.0
    %122 = vmatpush2.xpose.msra.mxu0 0.0
    %123 = vmatprep.subr.mxu0 0.0
    %124 = vmatpush2.xpose.msra.mxu0 0.0
    %125 = vmatprep.subr.mxu0 0.0
    %126 = vmatpush2.xpose.msra.mxu0 0.0
    %127 = vmatprep.subr.mxu0 0.0
    %128 = vmatpush2.xpose.msra.mxu0 0.0
    %129 = vmatprep.subr.mxu0 0.0
    %130 = vmatpush2.xpose.msra.mxu0 0.0
    %131 = vmatprep.subr.mxu0 0.0
    %132 = vmatpush2.xpose.msra.mxu0 0.0
    %133 = vmatprep.subr.mxu0 0.0
    %134 = vmatpush2.xpose.msra.mxu0 0.0
    %135 = vmatprep.subr.mxu0 0.0
    %136 = vmatpush2.xpose.msra.mxu0 0.0
    %137 = vmatprep.mubr.f32.mxu0 %v38
    %138 = vmatmul.mubr.f32.gmra.mxu0 %v37
    %v139 = vpop.f32.mrf.mxu0
    %v140 = vadd.f32 0.0, %v139
    %v141 = vpop.f32.mrf.mxu0
    %142 = vmatprep.mubr.f32.mxu0 %v46
    %143 = vmatmul.mubr.f32.gmra.mxu0 %v45
    %v144 = vpop.f32.mrf.mxu0
    %v145 = vadd.f32 0.0, %v144
    %v146 = vpop.f32.mrf.mxu0
    %147 = vmatprep.mubr.f32.mxu0 %v54
    %148 = vmatmul.mubr.f32.gmra.mxu0 %v53
    %v149 = vpop.f32.mrf.mxu0
    %v150 = vadd.f32 0.0, %v149
    %v151 = vpop.f32.mrf.mxu0
    %152 = vmatprep.mubr.f32.mxu0 %v62
    %153 = vmatmul.mubr.f32.gmra.mxu0 %v61
    %v154 = vpop.f32.mrf.mxu0
    %v155 = vadd.f32 0.0, %v154
    %v156 = vpop.f32.mrf.mxu0
    %157 = vdwg.mxu0
    %158 = vmatprep.subr.mxu0 0.0
    %159 = vmatpush1.xpose.msra.mxu0 0.0
    %160 = vmatprep.subr.mxu0 0.0
    %161 = vmatpush1.xpose.msra.mxu0 0.0
    %162 = vmatprep.subr.mxu0 0.0
    %163 = vmatpush1.xpose.msra.mxu0 0.0
    %164 = vmatprep.subr.mxu0 0.0
    %165 = vmatpush1.xpose.msra.mxu0 0.0
    %166 = vmatprep.subr.mxu0 0.0
    %167 = vmatpush1.xpose.msra.mxu0 0.0
    %168 = vmatprep.subr.mxu0 0.0
    %169 = vmatpush1.xpose.msra.mxu0 0.0
    %170 = vmatprep.subr.mxu0 0.0
    %171 = vmatpush1.xpose.msra.mxu0 0.0
    %172 = vmatprep.subr.mxu0 0.0
    %173 = vmatpush1.xpose.msra.mxu0 0.0
    %174 = vmatprep.subr.mxu0 0.0
    %175 = vmatpush1.xpose.msra.mxu0 0.0
    %176 = vmatprep.subr.mxu0 0.0
    %177 = vmatpush1.xpose.msra.mxu0 0.0
    %178 = vmatprep.subr.mxu0 0.0
    %179 = vmatpush1.xpose.msra.mxu0 0.0
    %180 = vmatprep.subr.mxu0 0.0
    %181 = vmatpush1.xpose.msra.mxu0 0.0
    %182 = vmatprep.subr.mxu0 %v64
    %183 = vmatpush1.xpose.msra.mxu0 %v63
    %184 = vmatprep.subr.mxu0 %v56
    %185 = vmatpush1.xpose.msra.mxu0 %v55
    %186 = vmatprep.subr.mxu0 %v48
    %187 = vmatpush1.xpose.msra.mxu0 %v47
    %188 = vmatprep.subr.mxu0 %v40
    %189 = vmatpush1.xpose.msra.mxu0 %v39
    %190 = vmatprep.subr.mxu0 0.0
    %191 = vmatpush2.xpose.msra.mxu0 0.0
    %192 = vmatprep.subr.mxu0 0.0
    %193 = vmatpush2.xpose.msra.mxu0 0.0
    %194 = vmatprep.subr.mxu0 0.0
    %195 = vmatpush2.xpose.msra.mxu0 0.0
    %196 = vmatprep.subr.mxu0 0.0
    %197 = vmatpush2.xpose.msra.mxu0 0.0
    %198 = vmatprep.subr.mxu0 0.0
    %199 = vmatpush2.xpose.msra.mxu0 0.0
    %200 = vmatprep.subr.mxu0 0.0
    %201 = vmatpush2.xpose.msra.mxu0 0.0
    %202 = vmatprep.subr.mxu0 0.0
    %203 = vmatpush2.xpose.msra.mxu0 0.0
    %204 = vmatprep.subr.mxu0 0.0
    %205 = vmatpush2.xpose.msra.mxu0 0.0
    %206 = vmatprep.subr.mxu0 0.0
    %207 = vmatpush2.xpose.msra.mxu0 0.0
    %208 = vmatprep.subr.mxu0 0.0
    %209 = vmatpush2.xpose.msra.mxu0 0.0
    %210 = vmatprep.subr.mxu0 0.0
    %211 = vmatpush2.xpose.msra.mxu0 0.0
    %212 = vmatprep.subr.mxu0 0.0
    %213 = vmatpush2.xpose.msra.mxu0 0.0
    %214 = vmatprep.subr.mxu0 0.0
    %215 = vmatpush2.xpose.msra.mxu0 0.0
    %216 = vmatprep.subr.mxu0 0.0
    %217 = vmatpush2.xpose.msra.mxu0 0.0
    %218 = vmatprep.subr.mxu0 0.0
    %219 = vmatpush2.xpose.msra.mxu0 0.0
    %220 = vmatprep.subr.mxu0 0.0
    %221 = vmatpush2.xpose.msra.mxu0 0.0
    %222 = vmatprep.mubr.f32.mxu0 %v40
    %223 = vmatmul.mubr.f32.gmra.mxu0 %v39
    %v224 = vpop.f32.mrf.mxu0
    %v225 = vadd.f32 %v140, %v224
    %v226 = vpop.f32.mrf.mxu0
    %227 = vmatprep.mubr.f32.mxu0 %v48
    %228 = vmatmul.mubr.f32.gmra.mxu0 %v47
    %v229 = vpop.f32.mrf.mxu0
    %v230 = vadd.f32 %v145, %v229
    %v231 = vpop.f32.mrf.mxu0
    %232 = vmatprep.mubr.f32.mxu0 %v56
    %233 = vmatmul.mubr.f32.gmra.mxu0 %v55
    %v234 = vpop.f32.mrf.mxu0
    %v235 = vadd.f32 %v150, %v234
    %v236 = vpop.f32.mrf.mxu0
    %237 = vmatprep.mubr.f32.mxu0 %v64
    %238 = vmatmul.mubr.f32.gmra.mxu0 %v63
    %v239 = vpop.f32.mrf.mxu0
    %v240 = vadd.f32 %v155, %v239
    %v241 = vpop.f32.mrf.mxu0
    %242 = vdwg.mxu0
    %243 = vmatprep.subr.mxu0 0.0
    %244 = vmatpush1.xpose.msra.mxu0 0.0
    %245 = vmatprep.subr.mxu0 0.0
    %246 = vmatpush1.xpose.msra.mxu0 0.0
    %247 = vmatprep.subr.mxu0 0.0
    %248 = vmatpush1.xpose.msra.mxu0 0.0
    %249 = vmatprep.subr.mxu0 0.0
    %250 = vmatpush1.xpose.msra.mxu0 0.0
    %251 = vmatprep.subr.mxu0 0.0
    %252 = vmatpush1.xpose.msra.mxu0 0.0
    %253 = vmatprep.subr.mxu0 0.0
    %254 = vmatpush1.xpose.msra.mxu0 0.0
    %255 = vmatprep.subr.mxu0 0.0
    %256 = vmatpush1.xpose.msra.mxu0 0.0
    %257 = vmatprep.subr.mxu0 0.0
    %258 = vmatpush1.xpose.msra.mxu0 0.0
    %259 = vmatprep.subr.mxu0 0.0
    %260 = vmatpush1.xpose.msra.mxu0 0.0
    %261 = vmatprep.subr.mxu0 0.0
    %262 = vmatpush1.xpose.msra.mxu0 0.0
    %263 = vmatprep.subr.mxu0 0.0
    %264 = vmatpush1.xpose.msra.mxu0 0.0
    %265 = vmatprep.subr.mxu0 0.0
    %266 = vmatpush1.xpose.msra.mxu0 0.0
    %267 = vmatprep.subr.mxu0 %v66
    %268 = vmatpush1.xpose.msra.mxu0 %v65
    %269 = vmatprep.subr.mxu0 %v58
    %270 = vmatpush1.xpose.msra.mxu0 %v57
    %271 = vmatprep.subr.mxu0 %v50
    %272 = vmatpush1.xpose.msra.mxu0 %v49
    %273 = vmatprep.subr.mxu0 %v42
    %274 = vmatpush1.xpose.msra.mxu0 %v41
    %275 = vmatprep.subr.mxu0 0.0
    %276 = vmatpush2.xpose.msra.mxu0 0.0
    %277 = vmatprep.subr.mxu0 0.0
    %278 = vmatpush2.xpose.msra.mxu0 0.0
    %279 = vmatprep.subr.mxu0 0.0
    %280 = vmatpush2.xpose.msra.mxu0 0.0
    %281 = vmatprep.subr.mxu0 0.0
    %282 = vmatpush2.xpose.msra.mxu0 0.0
    %283 = vmatprep.subr.mxu0 0.0
    %284 = vmatpush2.xpose.msra.mxu0 0.0
    %285 = vmatprep.subr.mxu0 0.0
    %286 = vmatpush2.xpose.msra.mxu0 0.0
    %287 = vmatprep.subr.mxu0 0.0
    %288 = vmatpush2.xpose.msra.mxu0 0.0
    %289 = vmatprep.subr.mxu0 0.0
    %290 = vmatpush2.xpose.msra.mxu0 0.0
    %291 = vmatprep.subr.mxu0 0.0
    %292 = vmatpush2.xpose.msra.mxu0 0.0
    %293 = vmatprep.subr.mxu0 0.0
    %294 = vmatpush2.xpose.msra.mxu0 0.0
    %295 = vmatprep.subr.mxu0 0.0
    %296 = vmatpush2.xpose.msra.mxu0 0.0
    %297 = vmatprep.subr.mxu0 0.0
    %298 = vmatpush2.xpose.msra.mxu0 0.0
    %299 = vmatprep.subr.mxu0 0.0
    %300 = vmatpush2.xpose.msra.mxu0 0.0
    %301 = vmatprep.subr.mxu0 0.0
    %302 = vmatpush2.xpose.msra.mxu0 0.0
    %303 = vmatprep.subr.mxu0 0.0
    %304 = vmatpush2.xpose.msra.mxu0 0.0
    %305 = vmatprep.subr.mxu0 0.0
    %306 = vmatpush2.xpose.msra.mxu0 0.0
    %307 = vmatprep.mubr.f32.mxu0 %v42
    %308 = vmatmul.mubr.f32.gmra.mxu0 %v41
    %v309 = vpop.f32.mrf.mxu0
    %v310 = vadd.f32 %v225, %v309
    %v311 = vpop.f32.mrf.mxu0
    %312 = vmatprep.mubr.f32.mxu0 %v50
    %313 = vmatmul.mubr.f32.gmra.mxu0 %v49
    %v314 = vpop.f32.mrf.mxu0
    %v315 = vadd.f32 %v230, %v314
    %v316 = vpop.f32.mrf.mxu0
    %317 = vmatprep.mubr.f32.mxu0 %v58
    %318 = vmatmul.mubr.f32.gmra.mxu0 %v57
    %v319 = vpop.f32.mrf.mxu0
    %v320 = vadd.f32 %v235, %v319
    %v321 = vpop.f32.mrf.mxu0
    %322 = vmatprep.mubr.f32.mxu0 %v66
    %323 = vmatmul.mubr.f32.gmra.mxu0 %v65
    %v324 = vpop.f32.mrf.mxu0
    %v325 = vadd.f32 %v240, %v324
    %v326 = vpop.f32.mrf.mxu0
    %327 = vdwg.mxu0
    %328 = vmatprep.subr.mxu0 0.0
    %329 = vmatpush1.xpose.msra.mxu0 0.0
    %330 = vmatprep.subr.mxu0 0.0
    %331 = vmatpush1.xpose.msra.mxu0 0.0
    %332 = vmatprep.subr.mxu0 0.0
    %333 = vmatpush1.xpose.msra.mxu0 0.0
    %334 = vmatprep.subr.mxu0 0.0
    %335 = vmatpush1.xpose.msra.mxu0 0.0
    %336 = vmatprep.subr.mxu0 0.0
    %337 = vmatpush1.xpose.msra.mxu0 0.0
    %338 = vmatprep.subr.mxu0 0.0
    %339 = vmatpush1.xpose.msra.mxu0 0.0
    %340 = vmatprep.subr.mxu0 0.0
    %341 = vmatpush1.xpose.msra.mxu0 0.0
    %342 = vmatprep.subr.mxu0 0.0
    %343 = vmatpush1.xpose.msra.mxu0 0.0
    %344 = vmatprep.subr.mxu0 0.0
    %345 = vmatpush1.xpose.msra.mxu0 0.0
    %346 = vmatprep.subr.mxu0 0.0
    %347 = vmatpush1.xpose.msra.mxu0 0.0
    %348 = vmatprep.subr.mxu0 0.0
    %349 = vmatpush1.xpose.msra.mxu0 0.0
    %350 = vmatprep.subr.mxu0 0.0
    %351 = vmatpush1.xpose.msra.mxu0 0.0
    %352 = vmatprep.subr.mxu0 %v68
    %353 = vmatpush1.xpose.msra.mxu0 %v67
    %354 = vmatprep.subr.mxu0 %v60
    %355 = vmatpush1.xpose.msra.mxu0 %v59
    %356 = vmatprep.subr.mxu0 %v52
    %357 = vmatpush1.xpose.msra.mxu0 %v51
    %358 = vmatprep.subr.mxu0 %v44
    %359 = vmatpush1.xpose.msra.mxu0 %v43
    %360 = vmatprep.subr.mxu0 0.0
    %361 = vmatpush2.xpose.msra.mxu0 0.0
    %362 = vmatprep.subr.mxu0 0.0
    %363 = vmatpush2.xpose.msra.mxu0 0.0
    %364 = vmatprep.subr.mxu0 0.0
    %365 = vmatpush2.xpose.msra.mxu0 0.0
    %366 = vmatprep.subr.mxu0 0.0
    %367 = vmatpush2.xpose.msra.mxu0 0.0
    %368 = vmatprep.subr.mxu0 0.0
    %369 = vmatpush2.xpose.msra.mxu0 0.0
    %370 = vmatprep.subr.mxu0 0.0
    %371 = vmatpush2.xpose.msra.mxu0 0.0
    %372 = vmatprep.subr.mxu0 0.0
    %373 = vmatpush2.xpose.msra.mxu0 0.0
    %374 = vmatprep.subr.mxu0 0.0
    %375 = vmatpush2.xpose.msra.mxu0 0.0
    %376 = vmatprep.subr.mxu0 0.0
    %377 = vmatpush2.xpose.msra.mxu0 0.0
    %378 = vmatprep.subr.mxu0 0.0
    %379 = vmatpush2.xpose.msra.mxu0 0.0
    %380 = vmatprep.subr.mxu0 0.0
    %381 = vmatpush2.xpose.msra.mxu0 0.0
    %382 = vmatprep.subr.mxu0 0.0
    %383 = vmatpush2.xpose.msra.mxu0 0.0
    %384 = vmatprep.subr.mxu0 0.0
    %385 = vmatpush2.xpose.msra.mxu0 0.0
    %386 = vmatprep.subr.mxu0 0.0
    %387 = vmatpush2.xpose.msra.mxu0 0.0
    %388 = vmatprep.subr.mxu0 0.0
    %389 = vmatpush2.xpose.msra.mxu0 0.0
    %390 = vmatprep.subr.mxu0 0.0
    %391 = vmatpush2.xpose.msra.mxu0 0.0
    %392 = vmatprep.mubr.f32.mxu0 %v44
    %393 = vmatmul.mubr.f32.gmra.mxu0 %v43
    %v394 = vpop.f32.mrf.mxu0
    %v395 = vadd.f32 %v310, %v394
    %v396 = vpop.f32.mrf.mxu0
    %397 = vmatprep.mubr.f32.mxu0 %v52
    %398 = vmatmul.mubr.f32.gmra.mxu0 %v51
    %v399 = vpop.f32.mrf.mxu0
    %v400 = vadd.f32 %v315, %v399
    %v401 = vpop.f32.mrf.mxu0
    %402 = vmatprep.mubr.f32.mxu0 %v60
    %403 = vmatmul.mubr.f32.gmra.mxu0 %v59
    %v404 = vpop.f32.mrf.mxu0
    %v405 = vadd.f32 %v320, %v404
    %v406 = vpop.f32.mrf.mxu0
    %407 = vmatprep.mubr.f32.mxu0 %v68
    %408 = vmatmul.mubr.f32.gmra.mxu0 %v67
    %v409 = vpop.f32.mrf.mxu0
    %v410 = vadd.f32 %v325, %v409
    %v411 = vpop.f32.mrf.mxu0
    %412 = vdwg.mxu0
    %v413 = vadd.f32 %v69, %v395
    %v414 = vadd.f32 %v70, %v400
    %v415 = vadd.f32 %v71, %v405
    %v416 = vadd.f32 %v72, %v410
    %vm417 = vcmask 261120
    %418 = vst.msk [vmem:[#allocation2] sm:$0xff] %vm417, %v413
    %419 = vst.msk [vmem:[#allocation2 + $0x8] sm:$0xff] %vm417, %v414
    %420 = vst.msk [vmem:[#allocation2 + $0x10] sm:$0xff] %vm417, %v415
    %421 = vst.msk [vmem:[#allocation2 + $0x18] sm:$0xff] %vm417, %v416
    %v422 = vld [vmem:[#allocation3] sm:$0xff]
    %v423 = vld [vmem:[#allocation3 + $0x8] sm:$0xff]
    %v424 = vld [vmem:[#allocation3 + $0x10] sm:$0xff]
    %v425 = vld [vmem:[#allocation3 + $0x18] sm:$0xff]
    %v426 = vmul.f32 %v37, %v37
    %v427 = vmul.f32 %v38, %v38
    %v428 = vmul.f32 %v39, %v39
    %v429 = vmul.f32 %v40, %v40
    %v430 = vmul.f32 %v41, %v41
    %v431 = vmul.f32 %v42, %v42
    %v432 = vmul.f32 %v43, %v43
    %v433 = vmul.f32 %v44, %v44
    %v434 = vmul.f32 %v45, %v45
    %v435 = vmul.f32 %v46, %v46
    %v436 = vmul.f32 %v47, %v47
    %v437 = vmul.f32 %v48, %v48
    %v438 = vmul.f32 %v49, %v49
    %v439 = vmul.f32 %v50, %v50
    %v440 = vmul.f32 %v51, %v51
    %v441 = vmul.f32 %v52, %v52
    %v442 = vmul.f32 %v53, %v53
    %v443 = vmul.f32 %v54, %v54
    %v444 = vmul.f32 %v55, %v55
    %v445 = vmul.f32 %v56, %v56
    %v446 = vmul.f32 %v57, %v57
    %v447 = vmul.f32 %v58, %v58
    %v448 = vmul.f32 %v59, %v59
    %v449 = vmul.f32 %v60, %v60
    %v450 = vmul.f32 %v61, %v61
    %v451 = vmul.f32 %v62, %v62
    %v452 = vmul.f32 %v63, %v63
    %v453 = vmul.f32 %v64, %v64
    %v454 = vmul.f32 %v65, %v65
    %v455 = vmul.f32 %v66, %v66
    %v456 = vmul.f32 %v67, %v67
    %v457 = vmul.f32 %v68, %v68
    %v458 = vadd.f32 %v426, %v427
    %v459 = vadd.f32 %v458, %v428
    %v460 = vadd.f32 %v459, %v429
    %v461 = vadd.f32 %v460, %v430
    %v462 = vadd.f32 %v461, %v431
    %v463 = vadd.f32 %v462, %v432
    %v464 = vadd.f32 %v463, %v433
    %465 = vadd.xlane.f32.xlu0 %v464
    %v466 = vpop.xlane.xlu0 %465
    %v467 = vadd.f32 %v434, %v435
    %v468 = vadd.f32 %v467, %v436
    %v469 = vadd.f32 %v468, %v437
    %v470 = vadd.f32 %v469, %v438
    %v471 = vadd.f32 %v470, %v439
    %v472 = vadd.f32 %v471, %v440
    %v473 = vadd.f32 %v472, %v441
    %474 = vadd.xlane.f32.xlu0 %v473
    %v475 = vpop.xlane.xlu0 %474
    %v476 = vadd.f32 %v442, %v443
    %v477 = vadd.f32 %v476, %v444
    %v478 = vadd.f32 %v477, %v445
    %v479 = vadd.f32 %v478, %v446
    %v480 = vadd.f32 %v479, %v447
    %v481 = vadd.f32 %v480, %v448
    %v482 = vadd.f32 %v481, %v449
    %483 = vadd.xlane.f32.xlu0 %v482
    %v484 = vpop.xlane.xlu0 %483
    %v485 = vadd.f32 %v450, %v451
    %v486 = vadd.f32 %v485, %v452
    %v487 = vadd.f32 %v486, %v453
    %v488 = vadd.f32 %v487, %v454
    %v489 = vadd.f32 %v488, %v455
    %v490 = vadd.f32 %v489, %v456
    %v491 = vadd.f32 %v490, %v457
    %492 = vadd.xlane.f32.xlu0 %v491
    %v493 = vpop.xlane.xlu0 %492
    %v494 = vadd.f32 %v422, %v466
    %v495 = vadd.f32 %v423, %v475
    %v496 = vadd.f32 %v424, %v484
    %v497 = vadd.f32 %v425, %v493
    %vm498 = vcmask 7168
    %499 = vst.msk [vmem:[#allocation3] sm:$0xff] %vm498, %v494
    %500 = vst.msk [vmem:[#allocation3 + $0x8] sm:$0xff] %vm498, %v495
    %501 = vst.msk [vmem:[#allocation3 + $0x10] sm:$0xff] %vm498, %v496
    %502 = vst.msk [vmem:[#allocation3 + $0x18] sm:$0xff] %vm498, %v497
    // Predicated region
    $region14: #{tpu_custom_call.1} parent=1 // pred_check
      %p503 = pneg %p23
    $region15: #{tpu_custom_call.1} parent=1 // pred_check_branch
      %505 = sbr.rel (%p503) target = $region17
    $region16: #{tpu_custom_call.1} parent=1 // pred_region
      %v506 = vld [vmem:[#allocation2] sm:$0xff]
      %v507 = vld [vmem:[#allocation2 + $0x8] sm:$0xff]
      %v508 = vld [vmem:[#allocation2 + $0x10] sm:$0xff]
      %v509 = vld [vmem:[#allocation2 + $0x18] sm:$0xff]
      %v510 = vld [vmem:[#allocation3] sm:$0xff]
      %v511 = vld [vmem:[#allocation3 + $0x8] sm:$0xff]
      %v512 = vld [vmem:[#allocation3 + $0x10] sm:$0xff]
      %v513 = vld [vmem:[#allocation3 + $0x18] sm:$0xff]
      %v514 = vlaneseq
      %v515 = vshrl.u32 %v514, 7
      %v516 = vadd.s32 %v515, 8
      %v517 = vadd.s32 %v515, 16
      %v518 = vadd.s32 %v515, 24
      %v519 = vlaneseq
      %v520 = vand.u32 %v519, 127
      %vm521 = vcmp.eq.s32.totalorder %v515, %v520
      %vm522 = vcmp.eq.s32.totalorder %v516, %v520
      %vm523 = vcmp.eq.s32.totalorder %v517, %v520
      %vm524 = vcmp.eq.s32.totalorder %v518, %v520
      %v525 = vsel %vm521, %v506, 0.0
      %v526 = vsel %vm522, %v507, 0.0
      %v527 = vsel %vm523, %v508, 0.0
      %v528 = vsel %vm524, %v509, 0.0
      %v529 = vsel %vm417, %v525, 0.0
      %v530 = vsel %vm417, %v526, 0.0
      %v531 = vadd.f32 %v529, %v530
      %v532 = vsel %vm417, %v527, 0.0
      %v533 = vadd.f32 %v531, %v532
      %v534 = vsel %vm417, %v528, 0.0
      %v535 = vadd.f32 %v533, %v534
      %v536 = vrot.slane %v535, 4
      %v537 = vadd.f32 %v535, %v536
      %v538 = vrot.slane %v537, 2
      %v539 = vadd.f32 %v537, %v538
      %v540 = vrot.slane %v539, 1
      %v541 = vadd.f32 %v539, %v540
      %543 = vset.pattern.permute.xlu0 0
      %544 = vperm.xlu0 %543, %v510
      %v545 = vpop.permute.xlu0 %544
      %548 = vset.pattern.permute.xlu0 0
      %549 = vperm.xlu0 %548, %v511
      %v550 = vpop.permute.xlu0 %549
      %553 = vset.pattern.permute.xlu0 0
      %554 = vperm.xlu0 %553, %v512
      %v555 = vpop.permute.xlu0 %554
      %558 = vset.pattern.permute.xlu0 0
      %559 = vperm.xlu0 %558, %v513
      %v560 = vpop.permute.xlu0 %559
      %v562 = vadd.f32 %v545, %v541
      %v563 = vadd.f32 %v550, %v541
      %v564 = vadd.f32 %v555, %v541
      %v565 = vadd.f32 %v560, %v541
      %v566 = vmul.f32 %v506, 2.0
      %v567 = vmul.f32 %v507, 2.0
      %v568 = vmul.f32 %v508, 2.0
      %v569 = vmul.f32 %v509, 2.0
      %v570 = vsub.f32 %v562, %v566
      %v571 = vsub.f32 %v563, %v567
      %v572 = vsub.f32 %v564, %v568
      %v573 = vsub.f32 %v565, %v569
      %v574 = vmax.f32 %v570, 1e-12
      %v575 = vmax.f32 %v571, 1e-12
      %v576 = vmax.f32 %v572, 1e-12
      %v577 = vmax.f32 %v573, 1e-12
      %v578 = vrsqrt.pop %v574
      %v579 = vmul.f32 %v574, %v578
      %vm580 = vcmp.eq.f32.partialorder %v574, inf
      %v581 = vsel %vm580, %v574, %v579
      %vm582 = vcmp.eq.f32.partialorder %v574, 0.0
      %v583 = vand.u32 %v574, 2147483648
      %v584 = vsel %vm582, %v583, %v581
      %v585 = vrsqrt.pop %v575
      %v586 = vmul.f32 %v575, %v585
      %vm587 = vcmp.eq.f32.partialorder %v575, inf
      %v588 = vsel %vm587, %v575, %v586
      %vm589 = vcmp.eq.f32.partialorder %v575, 0.0
      %v590 = vand.u32 %v575, 2147483648
      %v591 = vsel %vm589, %v590, %v588
      %v592 = vrsqrt.pop %v576
      %v593 = vmul.f32 %v576, %v592
      %vm594 = vcmp.eq.f32.partialorder %v576, inf
      %v595 = vsel %vm594, %v576, %v593
      %vm596 = vcmp.eq.f32.partialorder %v576, 0.0
      %v597 = vand.u32 %v576, 2147483648
      %v598 = vsel %vm596, %v597, %v595
      %v599 = vrsqrt.pop %v577
      %v600 = vmul.f32 %v577, %v599
      %vm601 = vcmp.eq.f32.partialorder %v577, inf
      %v602 = vsel %vm601, %v577, %v600
      %vm603 = vcmp.eq.f32.partialorder %v577, 0.0
      %v604 = vand.u32 %v577, 2147483648
      %v605 = vsel %vm603, %v604, %v602
      %v606 = vsel %vm521, 0.0, %v584
      %v607 = vsel %vm522, 0.0, %v591
      %v608 = vsel %vm523, 0.0, %v598
      %v609 = vsel %vm524, 0.0, %v605
      %v610 = vmul.f32 %v606, %v606
      %v611 = vmul.f32 %v607, %v607
      %v612 = vmul.f32 %v608, %v608
      %v613 = vmul.f32 %v609, %v609
      %v614 = vmul.f32 %v610, %v606
      %v615 = vmul.f32 %v611, %v607
      %v616 = vmul.f32 %v612, %v608
      %v617 = vmul.f32 %v613, %v609
      %v618 = vmul.f32 %v614, -3.0
      %v619 = vmul.f32 %v615, -3.0
      %v620 = vmul.f32 %v616, -3.0
      %v621 = vmul.f32 %v617, -3.0
      %624 = vrot.lane.b32.xlu0 %v620, 112
      %v625 = vpop.permute.xlu0 %624
      %626 = vrot.lane.b32.xlu0 %v621, 112
      %v627 = vpop.permute.xlu0 %626
      %v630 = vsel %vm521, -1e+30, %v625
      %v631 = vsel %vm522, -1e+30, %v627
      %vm632 = vcmask 130048
      %v633 = vsel %vm632, %v630, -inf
      %634 = vmax.xlane.f32.xlu0 %v633
      %v635 = vpop.xlane.xlu0 %634
      %v636 = vsel %vm632, %v631, -inf
      %637 = vmax.xlane.f32.xlu0 %v636
      %v638 = vpop.xlane.xlu0 %637
      %vm639 = vcmp.eq.f32.partialorder %v630, %v635
      %vm640 = vcmp.eq.f32.partialorder %v631, %v638
      %v641 = vsel %vm639, %v618, 0.0
      %v642 = vsel %vm640, %v619, 0.0
      %v643 = vsel %vm632, %v641, 0.0
      %644 = vadd.xlane.f32.xlu0 %v643
      %v645 = vpop.xlane.xlu0 %644
      %v646 = vsel %vm632, %v642, 0.0
      %647 = vadd.xlane.f32.xlu0 %v646
      %v648 = vpop.xlane.xlu0 %647
      %v649 = vsel %vm639, -1e+30, %v630
      %v650 = vsel %vm640, -1e+30, %v631
      %v651 = vsel %vm632, %v649, -inf
      %652 = vmax.xlane.f32.xlu0 %v651
      %v653 = vpop.xlane.xlu0 %652
      %v654 = vsel %vm632, %v650, -inf
      %655 = vmax.xlane.f32.xlu0 %v654
      %v656 = vpop.xlane.xlu0 %655
      %vm657 = vcmp.eq.f32.partialorder %v649, %v653
      %vm658 = vcmp.eq.f32.partialorder %v650, %v656
      %v659 = vsel %vm657, %v618, 0.0
      %v660 = vsel %vm658, %v619, 0.0
      %v661 = vsel %vm632, %v659, 0.0
      %662 = vadd.xlane.f32.xlu0 %v661
      %v663 = vpop.xlane.xlu0 %662
      %v664 = vsel %vm632, %v660, 0.0
      %665 = vadd.xlane.f32.xlu0 %v664
      %v666 = vpop.xlane.xlu0 %665
      %v667 = vsel %vm657, -1e+30, %v649
      %v668 = vsel %vm658, -1e+30, %v650
      %v669 = vsel %vm632, %v667, -inf
      %670 = vmax.xlane.f32.xlu0 %v669
      %v671 = vpop.xlane.xlu0 %670
      %v672 = vsel %vm632, %v668, -inf
      %673 = vmax.xlane.f32.xlu0 %v672
      %v674 = vpop.xlane.xlu0 %673
      %vm675 = vcmp.eq.f32.partialorder %v667, %v671
      %vm676 = vcmp.eq.f32.partialorder %v668, %v674
      %v677 = vsel %vm675, %v618, 0.0
      %v678 = vsel %vm676, %v619, 0.0
      %v679 = vsel %vm632, %v677, 0.0
      %680 = vadd.xlane.f32.xlu0 %v679
      %v681 = vpop.xlane.xlu0 %680
      %v682 = vsel %vm632, %v678, 0.0
      %683 = vadd.xlane.f32.xlu0 %v682
      %v684 = vpop.xlane.xlu0 %683
      %v685 = vsel %vm675, -1e+30, %v667
      %v686 = vsel %vm676, -1e+30, %v668
      %v687 = vsel %vm632, %v685, -inf
      %688 = vmax.xlane.f32.xlu0 %v687
      %v689 = vpop.xlane.xlu0 %688
      %v690 = vsel %vm632, %v686, -inf
      %691 = vmax.xlane.f32.xlu0 %v690
      %v692 = vpop.xlane.xlu0 %691
      %vm693 = vcmp.eq.f32.partialorder %v685, %v689
      %vm694 = vcmp.eq.f32.partialorder %v686, %v692
      %v695 = vsel %vm693, %v618, 0.0
      %v696 = vsel %vm694, %v619, 0.0
      %v697 = vsel %vm632, %v695, 0.0
      %698 = vadd.xlane.f32.xlu0 %v697
      %v699 = vpop.xlane.xlu0 %698
      %v700 = vsel %vm632, %v696, 0.0
      %701 = vadd.xlane.f32.xlu0 %v700
      %v702 = vpop.xlane.xlu0 %701
      %v703 = vmax.f32 %v681, %v699
      %v704 = vmax.f32 %v684, %v702
      %v705 = vsub.f32 %v681, %v703
      %v706 = vsub.f32 %v684, %v704
      %v707 = vmul.f32 %v705, 1.442695
      %v708 = vpow.pop %v707
      %v709 = vmul.f32 %v706, 1.442695
      %v710 = vpow.pop %v709
      %v711 = vsub.f32 %v699, %v703
      %v712 = vsub.f32 %v702, %v704
      %v713 = vmul.f32 %v711, 1.442695
      %v714 = vpow.pop %v713
      %v715 = vmul.f32 %v712, 1.442695
      %v716 = vpow.pop %v715
      %v717 = vadd.f32 %v708, %v714
      %v718 = vadd.f32 %v710, %v716
      %v719 = vlog2.pop %v717
      %v720 = vmul.f32 %v719, 0.6931472
      %v721 = vlog2.pop %v718
      %v722 = vmul.f32 %v721, 0.6931472
      %v723 = vadd.f32 %v703, %v720
      %v724 = vadd.f32 %v704, %v722
      %v725 = vsub.f32 %v681, %v723
      %v726 = vsub.f32 %v684, %v724
      %v727 = vadd.f32 %v725, 0.0
      %v728 = vadd.f32 %v726, 0.0
      %v729 = vmax.f32 %v663, %v723
      %v730 = vmax.f32 %v666, %v724
      %v731 = vsub.f32 %v663, %v729
      %v732 = vsub.f32 %v666, %v730
      %v733 = vmul.f32 %v731, 1.442695
      %v734 = vpow.pop %v733
      %v735 = vmul.f32 %v732, 1.442695
      %v736 = vpow.pop %v735
      %v737 = vsub.f32 %v723, %v729
      %v738 = vsub.f32 %v724, %v730
      %v739 = vmul.f32 %v737, 1.442695
      %v740 = vpow.pop %v739
      %v741 = vmul.f32 %v738, 1.442695
      %v742 = vpow.pop %v741
      %v743 = vadd.f32 %v734, %v740
      %v744 = vadd.f32 %v736, %v742
      %v745 = vlog2.pop %v743
      %v746 = vmul.f32 %v745, 0.6931472
      %v747 = vlog2.pop %v744
      %v748 = vmul.f32 %v747, 0.6931472
      %v749 = vadd.f32 %v729, %v746
      %v750 = vadd.f32 %v730, %v748
      %v751 = vsub.f32 %v663, %v749
      %v752 = vsub.f32 %v666, %v750
      %v753 = vadd.f32 %v727, %v751
      %v754 = vadd.f32 %v728, %v752
      %v755 = vmax.f32 %v645, %v749
      %v756 = vmax.f32 %v648, %v750
      %v757 = vsub.f32 %v645, %v755
      %v758 = vsub.f32 %v648, %v756
      %v759 = vmul.f32 %v757, 1.442695
      %v760 = vpow.pop %v759
      %v761 = vmul.f32 %v758, 1.442695
      %v762 = vpow.pop %v761
      %v763 = vsub.f32 %v749, %v755
      %v764 = vsub.f32 %v750, %v756
      %v765 = vmul.f32 %v763, 1.442695
      %v766 = vpow.pop %v765
      %v767 = vmul.f32 %v764, 1.442695
      %v768 = vpow.pop %v767
      %v769 = vadd.f32 %v760, %v766
      %v770 = vadd.f32 %v762, %v768
      %v771 = vlog2.pop %v769
      %v772 = vmul.f32 %v771, 0.6931472
      %v773 = vlog2.pop %v770
      %v774 = vmul.f32 %v773, 0.6931472
      %v775 = vadd.f32 %v755, %v772
      %v776 = vadd.f32 %v756, %v774
      %v777 = vsub.f32 %v645, %v775
      %v778 = vsub.f32 %v648, %v776
      %v779 = vadd.f32 %v753, %v777
      %v780 = vadd.f32 %v754, %v778
      %v781 = vsub.f32 0.0, %v779
      %v782 = vsub.f32 0.0, %v780
      %v783 = vadd.f32 %v781, %v782
      %v784 = vrot.slane %v783, 4
      %v785 = vadd.f32 %v783, %v784
      %v786 = vrot.slane %v785, 2
      %v787 = vadd.f32 %v785, %v786
      %v788 = vrot.slane %v787, 1
      %v789 = vadd.f32 %v787, %v788
      %v790 = vmul.f32 %v789, 0.0625
      %vm791 = vcmask 0
      %792 = vst.msk [vmem:[#allocation7] sm:$0x1] %vm791, %v790
    $region17: #{tpu_custom_call.1} parent=1 // pred_fallthru
      _
    // Predicated region
    $region18: #{tpu_custom_call.1} parent=1 // pred_check
      _
    $region19: #{tpu_custom_call.1} parent=1 // pred_check_branch
      %794 = sbr.rel (0) target = $region21
    $region20: #{tpu_custom_call.1} parent=1 // pred_region
      %s796 = ssub.s32 16, 16
      %797 = vsyncadd [#allocation6], %s796
      %s799 = sshll.u32 [#allocation7], 4
      %s800 = int_to_ptr.vmem [resolvable:$true] %s799
      %802 = dma.vmem_to_hbm [thread:$0]  %s800, 16, %s1, [#allocation6]
    $region21: #{tpu_custom_call.1} parent=1 // pred_fallthru
      _
    // Predicated region
    $region22: #{tpu_custom_call.1} parent=1 // pred_check
      _
    $region23: #{tpu_custom_call.1} parent=1 // pred_check_branch
      %804 = sbr.rel (0) target = $region25
    $region24: #{tpu_custom_call.1} parent=1 // pred_region
      %805 = dma.done [#allocation6], 16
    $region25: #{tpu_custom_call.1} parent=1 // pred_fallthru
      _
    %806 = vsyncpa [#allocation5], 1
    %807 = vsyncpa [#allocation6], 1

</llo_original>
